<compile_context>
chip_gen: v7x
topology: tpu7x:2x2x1
jax: 0.10.0
libtpu: 0.0.40
codegen_flags: <defaults>
</compile_context>

<pallas_src>
import functools
import math

import jax
import jax.numpy as jnp
from jax.experimental import pallas as pl
from jax.experimental.pallas import tpu as pltpu

LANE = 128    # padded hidden/lane width for the resident weight slabs
OUT_PAD = 8   # lane-padded output width (real Q-values are columns [0, 2))


def _round_up(x, m):
    return ((x + m - 1) // m) * m


def _choose_tile(batch, block_rows):
    """Batch tile (multiple of 8, <= block_rows) minimizing padded rows."""
    block_rows = max(128, block_rows)
    b8 = _round_up(max(batch, 1), 8)
    if b8 <= block_rows:
        return b8                               # single tile, only 8-row alignment pad
    step = 128
    cands = range((block_rows // step) * step, step - 1, -step)
    # Minimize total padded rows; tie-break toward the largest tile (fewer steps).
    return min(cands, key=lambda tb: (_round_up(b8, tb) - b8, -tb))


def qnetwork_kernel(x_ref, w_ref, b_ref, o_ref):
    """One batch tile through the whole 3-layer MLP (all f32).

    x_ref: (TB, F_pad)    f32  raw activations (F_pad = real features, no 128-pad)
    w_ref: (3, 128, 128)  f32  packed zero-padded weights (VMEM resident)
    b_ref: (3, 1,   128)  f32  packed zero-padded biases  (VMEM resident)
    o_ref: (TB, OUT_PAD)  f32  narrow output; Q-values in columns [0, 2)
    """
    f_in = x_ref.shape[1]
    n_layers = w_ref.shape[0]

    # Layer 1: contract directly over the real feature width (TB,F)@(F,128);
    # only the top F rows of the padded weight slab are read.
    acc = jnp.dot(x_ref[...], w_ref[0, :f_in, :],
                  preferred_element_type=jnp.float32)
    acc = jnp.maximum(acc + b_ref[0], 0.0)

    # Layers 2..L: full (TB,128)@(128,128) MXU tiles.  The PyTorch forward
    # applies ReLU after layer3 too, so the last layer is not special-cased.
    for layer in range(1, n_layers):
        acc = jnp.dot(acc, w_ref[layer], preferred_element_type=jnp.float32)
        acc = jnp.maximum(acc + b_ref[layer], 0.0)

    # Narrow store: only the first OUT_PAD lanes hit HBM (16x less writeback
    # than a full 128-wide f32 slab).  Columns 2..OUT_PAD-1 are exact zeros.
    o_ref[...] = acc[:, : o_ref.shape[1]]


@functools.partial(jax.jit, static_argnames=("out_dim", "block_rows"))
def qnetwork_forward_batched(x_flat, w_slab, b_slab, *, out_dim=2, block_rows=1024):
    """Batched forward: x_flat (B, in_features) f32 -> (B, out_dim) Q-values."""
    B, F = x_flat.shape
    D = w_slab.shape[-1]
    F_pad = _round_up(F, 8)
    assert F_pad <= D, (F, D)

    TB = _choose_tile(B, block_rows)
    B_pad = _round_up(_round_up(B, 8), TB)

    x_in = x_flat.astype(jnp.float32)
    if (B_pad, F_pad) != (B, F):
        # Only cheap row-alignment / 8-multiple feature padding (no 128-lane
        # feature pad, no dtype-cast pass).  Padded rows produce nonzero
        # outputs (ReLU of propagated biases) but are sliced off below.
        x_in = jnp.pad(x_in, ((0, B_pad - B), (0, F_pad - F)))

    out = pl.pallas_call(
        qnetwork_kernel,
        out_shape=jax.ShapeDtypeStruct((B_pad, OUT_PAD), jnp.float32),
        grid_spec=pltpu.PrefetchScalarGridSpec(
            num_scalar_prefetch=0,
            grid=(B_pad // TB,),
            in_specs=[
                pl.BlockSpec((TB, F_pad), lambda i: (i, 0)),          # batch tile
                pl.BlockSpec(w_slab.shape, lambda i: (0, 0, 0)),      # resident weights
                pl.BlockSpec(b_slab.shape, lambda i: (0, 0, 0)),      # resident biases
            ],
            out_specs=pl.BlockSpec((TB, OUT_PAD), lambda i: (i, 0)),
        ),
        # "parallel" is accepted on every generation; on v7x this batch axis
        # may additionally be core-split (pltpu.CORE_PARALLEL) when grid >= 2.
        compiler_params=pltpu.CompilerParams(
            dimension_semantics=("parallel",)),
    )(x_in, w_slab, b_slab)
    return out[:B, :out_dim]


def qnetwork_forward(x, w_slab, b_slab):
    """Module-exact forward: x (2, lookback) -> (1, 2).

    Mirrors the PyTorch forward (unsqueeze(0) -> flatten -> relu(l1) ->
    relu(l2) -> relu(l3)).  At B=1 this is a single TB=8 tile fed the raw
    16-feature input, so only the fixed kernel-launch cost remains.
    """
    x_flat = x.reshape(1, -1)
    return qnetwork_forward_batched(x_flat, w_slab, b_slab)


def pack_params(params, d_pad=LANE):
    """Pack (w1,b1,w2,b2,w3,b3) into two zero-padded f32 slabs.

    w_slab: (3, d_pad, d_pad) f32 — layer l weight in [:in_l, :out_l]
    b_slab: (3, 1,     d_pad) f32 — layer l bias   in [0,    :out_l]
    Weights must already be (in_features, out_features); when importing a
    torch.nn.Linear state dict, pass weight.T.  Zero padding keeps the padded
    matmuls numerically exact.
    """
    ws, bs = params[0::2], params[1::2]
    assert len(ws) == len(bs) == 3
    w_slab = jnp.zeros((3, d_pad, d_pad), jnp.float32)
    b_slab = jnp.zeros((3, 1, d_pad), jnp.float32)
    for l, (w, b) in enumerate(zip(ws, bs)):
        assert w.shape[0] <= d_pad and w.shape[1] <= d_pad, w.shape
        w_slab = w_slab.at[l, : w.shape[0], : w.shape[1]].set(w)
        b_slab = b_slab.at[l, 0, : b.shape[0]].set(b)
    return w_slab, b_slab


def init_params(key, lookback, n1=32):
    """Deterministic init matching the PyTorch module.

    Weights: kaiming_uniform_(fan_in, relu) -> U(-b, b), b = sqrt(2)*sqrt(3/fan_in)
    Biases:  PyTorch Linear default         -> U(-1/sqrt(fan_in), 1/sqrt(fan_in))
    Stored as W: (in_features, out_features), b: (out_features,).
    """
    in_dim = 2 * lookback
    dims = [(in_dim, n1), (n1, n1), (n1, 2)]
    params = []
    for fan_in, fan_out in dims:
        key, kw, kb = jax.random.split(key, 3)
        w_bound = math.sqrt(2.0) * math.sqrt(3.0 / fan_in)
        b_bound = 1.0 / math.sqrt(fan_in)
        w = jax.random.uniform(kw, (fan_in, fan_out), jnp.float32, -w_bound, w_bound)
        b = jax.random.uniform(kb, (fan_out,), jnp.float32, -b_bound, b_bound)
        params += [w, b]
    return tuple(params)


def reference_forward(x_flat, params):
    """Exact-f32 plain-JAX reference mirroring the PyTorch forward."""
    w1, b1, w2, b2, w3, b3 = params
    h = x_flat.astype(jnp.float32)
    for w, b in ((w1, b1), (w2, b2), (w3, b3)):
        h = jnp.maximum(
            jnp.dot(h, w, precision=jax.lax.Precision.HIGHEST) + b, 0.0)
    return h


if __name__ == "__main__":
    lookback = 8   # module input x is (2, lookback) -> 16 flattened features
    n1 = 32

    key = jax.random.PRNGKey(0)
    key, kx, kb1, kb2 = jax.random.split(key, 4)
    params = init_params(key, lookback, n1)
    w_slab, b_slab = pack_params(params)

    # Tolerance note: the exact-f32 reference uses precision=HIGHEST; depending
    # on the Mosaic f32-matmul lowering (multi-pass vs single bf16 pass) the
    # kernel may carry a small extra rounding error, so the check is moderate.
    ATOL = RTOL = 5e-2

    # (a) Module-exact, batch-1 forward (PyTorch semantics: unsqueeze + flatten).
    x = jax.random.normal(kx, (2, lookback), dtype=jnp.float32)
    out = jax.block_until_ready(qnetwork_forward(x, w_slab, b_slab))
    ref = reference_forward(x.reshape(1, -1), params)
    assert out.shape == (1, 2), out.shape
    assert jnp.allclose(out, ref, atol=ATOL, rtol=RTOL), (out, ref)

    # (b) Batched forward, single large tile (B=384 <= default block_rows).
    B = 384
    xb = jax.random.normal(kb1, (B, 2 * lookback), dtype=jnp.float32)
    outb = jax.block_until_ready(qnetwork_forward_batched(xb, w_slab, b_slab))
    refb = reference_forward(xb, params)
    assert outb.shape == (B, 2), outb.shape
    assert jnp.allclose(outb, refb, atol=ATOL, rtol=RTOL), \
        float(jnp.max(jnp.abs(outb - refb)))

    # (c) Batched forward exercising a multi-step grid + padding-minimizing
    #     tile choice (B=260 with block_rows=256 picks TB=128 -> 3 grid steps).
    B2 = 260
    xc = jax.random.normal(kb2, (B2, 2 * lookback), dtype=jnp.float32)
    outc = jax.block_until_ready(
        qnetwork_forward_batched(xc, w_slab, b_slab, block_rows=256))
    refc = reference_forward(xc, params)
    assert outc.shape == (B2, 2), outc.shape
    assert jnp.allclose(outc, refc, atol=ATOL, rtol=RTOL), \
        float(jnp.max(jnp.abs(outc - refc)))

    print("KERNEL_OK")
</pallas_src>

<mosaic_0001>
module attributes {stable_mosaic.version = 11 : i64} {
  func.func @qnetwork_kernel(%arg0: i32, %arg1: memref<8x16xf32, #tpu.memory_space<vmem>>, %arg2: memref<3x128x128xf32, #tpu.memory_space<vmem>>, %arg3: memref<3x1x128xf32, #tpu.memory_space<vmem>>, %arg4: memref<8x8xf32, #tpu.memory_space<vmem>>) attributes {dimension_semantics = [#tpu.dimension_semantics<parallel>], iteration_bounds = array<i64: 1>, scalar_prefetch = 0 : i64, scratch_operands = 0 : i64, tpu.core_type = #tpu.core_type<tc>, window_params = [{transform_indices = @transform_0, window_bounds = array<i64: 8, 16>}, {pipeline_mode = #tpu.pipeline_mode<synchronous>, transform_indices = @transform_1, window_bounds = array<i64: 3, 128, 128>}, {pipeline_mode = #tpu.pipeline_mode<synchronous>, transform_indices = @transform_2, window_bounds = array<i64: 3, 1, 128>}, {transform_indices = @transform_3, window_bounds = array<i64: 8, 8>}]} {
    %c0 = arith.constant 0 : index
    %c0_0 = arith.constant 0 : index
    %0 = vector.load %arg1[%c0, %c0_0] : memref<8x16xf32, #tpu.memory_space<vmem>>, vector<8x16xf32>
    %c0_1 = arith.constant 0 : index
    %c0_2 = arith.constant 0 : index
    %c0_3 = arith.constant 0 : index
    %1 = vector.load %arg2[%c0_1, %c0_2, %c0_3] : memref<3x128x128xf32, #tpu.memory_space<vmem>>, vector<1x16x128xf32>
    %2 = vector.shape_cast %1 : vector<1x16x128xf32> to vector<16x128xf32>
    %cst = arith.constant dense<0.000000e+00> : vector<8x128xf32>
    %3 = tpu.matmul %0, %2, %cst {dimension_numbers = #tpu.dot_dimension_numbers<[1], [0], [0], [1], [0, 0, 1, 1], [], []>} : vector<8x16xf32>, vector<16x128xf32>, vector<8x128xf32> -> vector<8x128xf32>
    %c0_4 = arith.constant 0 : index
    %c0_5 = arith.constant 0 : index
    %c0_6 = arith.constant 0 : index
    %4 = vector.load %arg3[%c0_4, %c0_5, %c0_6] : memref<3x1x128xf32, #tpu.memory_space<vmem>>, vector<1x1x128xf32>
    %5 = vector.shape_cast %4 : vector<1x1x128xf32> to vector<1x128xf32>
    %6 = vector.broadcast %5 : vector<1x128xf32> to vector<8x128xf32>
    %7 = arith.addf %3, %6 : vector<8x128xf32>
    %cst_7 = arith.constant 0.000000e+00 : f32
    %8 = vector.broadcast %cst_7 : f32 to vector<8x128xf32>
    %9 = arith.maximumf %7, %8 : vector<8x128xf32>
    %c1 = arith.constant 1 : index
    %c0_8 = arith.constant 0 : index
    %c0_9 = arith.constant 0 : index
    %10 = vector.load %arg2[%c1, %c0_8, %c0_9] : memref<3x128x128xf32, #tpu.memory_space<vmem>>, vector<1x128x128xf32>
    %11 = vector.shape_cast %10 : vector<1x128x128xf32> to vector<128x128xf32>
    %cst_10 = arith.constant dense<0.000000e+00> : vector<8x128xf32>
    %12 = tpu.matmul %9, %11, %cst_10 {dimension_numbers = #tpu.dot_dimension_numbers<[1], [0], [0], [1], [0, 0, 1, 1], [], []>} : vector<8x128xf32>, vector<128x128xf32>, vector<8x128xf32> -> vector<8x128xf32>
    %c1_11 = arith.constant 1 : index
    %c0_12 = arith.constant 0 : index
    %c0_13 = arith.constant 0 : index
    %13 = vector.load %arg3[%c1_11, %c0_12, %c0_13] : memref<3x1x128xf32, #tpu.memory_space<vmem>>, vector<1x1x128xf32>
    %14 = vector.shape_cast %13 : vector<1x1x128xf32> to vector<1x128xf32>
    %15 = vector.broadcast %14 : vector<1x128xf32> to vector<8x128xf32>
    %16 = arith.addf %12, %15 : vector<8x128xf32>
    %cst_14 = arith.constant 0.000000e+00 : f32
    %17 = vector.broadcast %cst_14 : f32 to vector<8x128xf32>
    %18 = arith.maximumf %16, %17 : vector<8x128xf32>
    %c2 = arith.constant 2 : index
    %c0_15 = arith.constant 0 : index
    %c0_16 = arith.constant 0 : index
    %19 = vector.load %arg2[%c2, %c0_15, %c0_16] : memref<3x128x128xf32, #tpu.memory_space<vmem>>, vector<1x128x128xf32>
    %20 = vector.shape_cast %19 : vector<1x128x128xf32> to vector<128x128xf32>
    %cst_17 = arith.constant dense<0.000000e+00> : vector<8x128xf32>
    %21 = tpu.matmul %18, %20, %cst_17 {dimension_numbers = #tpu.dot_dimension_numbers<[1], [0], [0], [1], [0, 0, 1, 1], [], []>} : vector<8x128xf32>, vector<128x128xf32>, vector<8x128xf32> -> vector<8x128xf32>
    %c2_18 = arith.constant 2 : index
    %c0_19 = arith.constant 0 : index
    %c0_20 = arith.constant 0 : index
    %22 = vector.load %arg3[%c2_18, %c0_19, %c0_20] : memref<3x1x128xf32, #tpu.memory_space<vmem>>, vector<1x1x128xf32>
    %23 = vector.shape_cast %22 : vector<1x1x128xf32> to vector<1x128xf32>
    %24 = vector.broadcast %23 : vector<1x128xf32> to vector<8x128xf32>
    %25 = arith.addf %21, %24 : vector<8x128xf32>
    %cst_21 = arith.constant 0.000000e+00 : f32
    %26 = vector.broadcast %cst_21 : f32 to vector<8x128xf32>
    %27 = arith.maximumf %25, %26 : vector<8x128xf32>
    %28 = vector.extract_strided_slice %27 {offsets = [0, 0], sizes = [8, 8], strides = [1, 1]} : vector<8x128xf32> to vector<8x8xf32>
    %c0_22 = arith.constant 0 : index
    %c0_23 = arith.constant 0 : index
    %29 = vector.load %arg4[%c0_22, %c0_23] : memref<8x8xf32, #tpu.memory_space<vmem>>, vector<8x8xf32>
    tpu.vector_store %arg4[%c0_22, %c0_23], %28 {strides = array<i32>} : memref<8x8xf32, #tpu.memory_space<vmem>>, vector<8x8xf32>,
    return
  }
  func.func @transform_0(%arg0: i32) -> (i32, i32) {
    %c0_i32 = arith.constant 0 : i32
    %c0_i32_0 = arith.constant 0 : i32
    return %arg0, %c0_i32 : i32, i32
  }
  func.func @transform_1(%arg0: i32) -> (i32, i32, i32) {
    %c0_i32 = arith.constant 0 : i32
    %c0_i32_0 = arith.constant 0 : i32
    %c0_i32_1 = arith.constant 0 : i32
    %c0_i32_2 = arith.constant 0 : i32
    return %c0_i32, %c0_i32_0, %c0_i32_1 : i32, i32, i32
  }
  func.func @transform_2(%arg0: i32) -> (i32, i32, i32) {
    %c0_i32 = arith.constant 0 : i32
    %c0_i32_0 = arith.constant 0 : i32
    %c0_i32_1 = arith.constant 0 : i32
    %c0_i32_2 = arith.constant 0 : i32
    return %c0_i32, %c0_i32_0, %c0_i32_1 : i32, i32, i32
  }
  func.func @transform_3(%arg0: i32) -> (i32, i32) {
    %c0_i32 = arith.constant 0 : i32
    %c0_i32_0 = arith.constant 0 : i32
    return %arg0, %c0_i32 : i32, i32
  }
}

</mosaic_0001>

<llo_original>
// kernel: qnetwork_forward_batched.1
$region0: #{qnetwork_forward_batched.1}
  #allocation0 [shape = 'u32[]', space=smem, size = 0x4, offset = 0x4, fixed_abs, tag = 'smem constant byte address 0x4 - core index']
  #allocation1 [shape = 'u32[144,128]{1,0:T(1,128)}', space=vmem, size = 0x12000, scoped, tag = 'internal scratch']
  %s0 = inlined_call_operand.vmem [shape: f32[8,16], index: 0, kind: input, shape index: {}]
  %s1 = inlined_call_operand.hbm [shape: f32[3,128,128], index: 1, kind: input, shape index: {}]
  %s2 = inlined_call_operand.vmem [shape: f32[3,1,128], index: 2, kind: input, shape index: {}]
  %s3 = inlined_call_operand.vmem [shape: f32[8,8], index: 3, kind: output, shape index: {}]
  %s4 = sld [smem:[#allocation0]]
  $region26: #{qnetwork_forward_batched.1} parent=0
    _
  %s6 = ssub.s32 1, %s4
  %s7 = scalar_select 0, %s6, %s4
  $region1: #{qnetwork_forward_batched.1} parent=0
    #allocation2 [shape = 'u8[196608]{0}', space=vmem, size = 0x30000, scoped, tag = 'input window, operand 1, single buffered']
    #allocation3 [shape = 's32[1]{0}', space=sflag, size = 0x4, scoped, tag = 'scoped memory for qnetwork_forward_batched.1']
    %8 = vsyncpa [#allocation3], 0
    // Predicated region
    $region2: #{qnetwork_forward_batched.1} parent=1 // pred_check
      _
    $region3: #{qnetwork_forward_batched.1} parent=1 // pred_check_branch
      %10 = sbr.rel (0) target = $region5
    $region4: #{qnetwork_forward_batched.1} parent=1 // pred_region
      _
    $region5: #{qnetwork_forward_batched.1} parent=1 // pred_fallthru
      _
    // Predicated region
    $region6: #{qnetwork_forward_batched.1} parent=1 // pred_check
      _
    $region7: #{qnetwork_forward_batched.1} parent=1 // pred_check_branch
      %12 = sbr.rel (0) target = $region9
    $region8: #{qnetwork_forward_batched.1} parent=1 // pred_region
      %s14 = ssub.s32 6144, 6144
      %15 = vsyncadd [#allocation3], %s14
      %s16 = sshll.u32 [#allocation2], 4
      %s17 = int_to_ptr.vmem [resolvable:$true] %s16
      %22 = dma.hbm_to_vmem [thread:$0]  %s1, 6144, %s17, [#allocation3], 128, 128, 8
    $region9: #{qnetwork_forward_batched.1} parent=1 // pred_fallthru
      _
    // Predicated region
    $region10: #{qnetwork_forward_batched.1} parent=1 // pred_check
      _
    $region11: #{qnetwork_forward_batched.1} parent=1 // pred_check_branch
      %24 = sbr.rel (0) target = $region13
    $region12: #{qnetwork_forward_batched.1} parent=1 // pred_region
      _
    $region13: #{qnetwork_forward_batched.1} parent=1 // pred_fallthru
      _
    // Predicated region
    $region14: #{qnetwork_forward_batched.1} parent=1 // pred_check
      _
    $region15: #{qnetwork_forward_batched.1} parent=1 // pred_check_branch
      %26 = sbr.rel (0) target = $region17
    $region16: #{qnetwork_forward_batched.1} parent=1 // pred_region
      %27 = dma.done [#allocation3], 6144
    $region17: #{qnetwork_forward_batched.1} parent=1 // pred_fallthru
      _
    %v28 = vld [vmem:[%s0] sm:$0xff]
    %v29 = vld [vmem:[#allocation2] sm:$0xff]
    %v30 = vld [vmem:[#allocation2 + $0x8] sm:$0xff]
    %v31 = vld [vmem:[%s2] sm:$0x1]
    %v33 = vlaneseq
    %v34 = vshrl.u32 %v33, 7
    %v35 = vsub.s32 0, %v34
    %v36 = vrot.slane %v31, %v35
    %vm38 = vcmask 130048
    %v40 = vsel %vm38, %v28, 0
    %42 = vmatprep.subr.mxu0 0.0
    %43 = vmatpush1.msra.mxu0 %v29
    %44 = vmatprep.subr.mxu0 0.0
    %45 = vmatpush1.msra.mxu0 %v30
    %46 = vmatprep.subr.mxu0 0.0
    %47 = vmatpush1.msra.mxu0 0.0
    %48 = vmatprep.subr.mxu0 0.0
    %49 = vmatpush1.msra.mxu0 0.0
    %50 = vmatprep.subr.mxu0 0.0
    %51 = vmatpush1.msra.mxu0 0.0
    %52 = vmatprep.subr.mxu0 0.0
    %53 = vmatpush1.msra.mxu0 0.0
    %54 = vmatprep.subr.mxu0 0.0
    %55 = vmatpush1.msra.mxu0 0.0
    %56 = vmatprep.subr.mxu0 0.0
    %57 = vmatpush1.msra.mxu0 0.0
    %58 = vmatprep.subr.mxu0 0.0
    %59 = vmatpush1.msra.mxu0 0.0
    %60 = vmatprep.subr.mxu0 0.0
    %61 = vmatpush1.msra.mxu0 0.0
    %62 = vmatprep.subr.mxu0 0.0
    %63 = vmatpush1.msra.mxu0 0.0
    %64 = vmatprep.subr.mxu0 0.0
    %65 = vmatpush1.msra.mxu0 0.0
    %66 = vmatprep.subr.mxu0 0.0
    %67 = vmatpush1.msra.mxu0 0.0
    %68 = vmatprep.subr.mxu0 0.0
    %69 = vmatpush1.msra.mxu0 0.0
    %70 = vmatprep.subr.mxu0 0.0
    %71 = vmatpush1.msra.mxu0 0.0
    %72 = vmatprep.subr.mxu0 0.0
    %73 = vmatpush1.msra.mxu0 0.0
    %74 = vmatprep.subr.mxu0 0.0
    %75 = vmatpush1.msra.mxu0 0.0
    %76 = vmatprep.subr.mxu0 0.0
    %77 = vmatpush1.msra.mxu0 0.0
    %78 = vmatprep.subr.mxu0 0.0
    %79 = vmatpush1.msra.mxu0 0.0
    %80 = vmatprep.subr.mxu0 0.0
    %81 = vmatpush1.msra.mxu0 0.0
    %82 = vmatprep.subr.mxu0 0.0
    %83 = vmatpush1.msra.mxu0 0.0
    %84 = vmatprep.subr.mxu0 0.0
    %85 = vmatpush1.msra.mxu0 0.0
    %86 = vmatprep.subr.mxu0 0.0
    %87 = vmatpush1.msra.mxu0 0.0
    %88 = vmatprep.subr.mxu0 0.0
    %89 = vmatpush1.msra.mxu0 0.0
    %90 = vmatprep.subr.mxu0 0.0
    %91 = vmatpush1.msra.mxu0 0.0
    %92 = vmatprep.subr.mxu0 0.0
    %93 = vmatpush1.msra.mxu0 0.0
    %94 = vmatprep.subr.mxu0 0.0
    %95 = vmatpush1.msra.mxu0 0.0
    %96 = vmatprep.subr.mxu0 0.0
    %97 = vmatpush1.msra.mxu0 0.0
    %98 = vmatprep.subr.mxu0 0.0
    %99 = vmatpush1.msra.mxu0 0.0
    %100 = vmatprep.subr.mxu0 0.0
    %101 = vmatpush1.msra.mxu0 0.0
    %102 = vmatprep.subr.mxu0 0.0
    %103 = vmatpush1.msra.mxu0 0.0
    %104 = vmatprep.subr.mxu0 0.0
    %105 = vmatpush1.msra.mxu0 0.0
    %106 = vmatprep.mubr.f32.mxu0 0.0
    %107 = vmatmul.mubr.f32.gmra.mrb[0].mxu0 %v40
    %v108 = vpop.f32.mrb[0].mxu0
    %v109 = vadd.f32 %v36, %v108
    %v110 = vpop.f32.mrb[0].mxu0
    %111 = vdwg.mxu0
    %v112 = vmax.f32 %v109, 0.0
    %s113 = scalar_lea.vmem [#allocation2], 128
    %v114 = vld [vmem:[%s113] sm:$0xff]
    %v115 = vld [vmem:[%s113 + $0x8] sm:$0xff]
    %v116 = vld [vmem:[%s113 + $0x10] sm:$0xff]
    %v117 = vld [vmem:[%s113 + $0x18] sm:$0xff]
    %v118 = vld [vmem:[%s113 + $0x20] sm:$0xff]
    %v119 = vld [vmem:[%s113 + $0x28] sm:$0xff]
    %v120 = vld [vmem:[%s113 + $0x30] sm:$0xff]
    %v121 = vld [vmem:[%s113 + $0x38] sm:$0xff]
    %v122 = vld [vmem:[%s113 + $0x40] sm:$0xff]
    %v123 = vld [vmem:[%s113 + $0x48] sm:$0xff]
    %v124 = vld [vmem:[%s113 + $0x50] sm:$0xff]
    %v125 = vld [vmem:[%s113 + $0x58] sm:$0xff]
    %v126 = vld [vmem:[%s113 + $0x60] sm:$0xff]
    %v127 = vld [vmem:[%s113 + $0x68] sm:$0xff]
    %v128 = vld [vmem:[%s113 + $0x70] sm:$0xff]
    %v129 = vld [vmem:[%s113 + $0x78] sm:$0xff]
    %s130 = scalar_lea.vmem %s2, 1
    %v131 = vld [vmem:[%s130] sm:$0x1]
    %v133 = vlaneseq
    %v134 = vshrl.u32 %v133, 7
    %v135 = vsub.s32 0, %v134
    %v136 = vrot.slane %v131, %v135
    %138 = vmatprep.subr.mxu0 0.0
    %139 = vmatpush1.msra.mxu0 %v114
    %140 = vmatprep.subr.mxu0 0.0
    %141 = vmatpush1.msra.mxu0 %v115
    %142 = vmatprep.subr.mxu0 0.0
    %143 = vmatpush1.msra.mxu0 %v116
    %144 = vmatprep.subr.mxu0 0.0
    %145 = vmatpush1.msra.mxu0 %v117
    %146 = vmatprep.subr.mxu0 0.0
    %147 = vmatpush1.msra.mxu0 %v118
    %148 = vmatprep.subr.mxu0 0.0
    %149 = vmatpush1.msra.mxu0 %v119
    %150 = vmatprep.subr.mxu0 0.0
    %151 = vmatpush1.msra.mxu0 %v120
    %152 = vmatprep.subr.mxu0 0.0
    %153 = vmatpush1.msra.mxu0 %v121
    %154 = vmatprep.subr.mxu0 0.0
    %155 = vmatpush1.msra.mxu0 %v122
    %156 = vmatprep.subr.mxu0 0.0
    %157 = vmatpush1.msra.mxu0 %v123
    %158 = vmatprep.subr.mxu0 0.0
    %159 = vmatpush1.msra.mxu0 %v124
    %160 = vmatprep.subr.mxu0 0.0
    %161 = vmatpush1.msra.mxu0 %v125
    %162 = vmatprep.subr.mxu0 0.0
    %163 = vmatpush1.msra.mxu0 %v126
    %164 = vmatprep.subr.mxu0 0.0
    %165 = vmatpush1.msra.mxu0 %v127
    %166 = vmatprep.subr.mxu0 0.0
    %167 = vmatpush1.msra.mxu0 %v128
    %168 = vmatprep.subr.mxu0 0.0
    %169 = vmatpush1.msra.mxu0 %v129
    %170 = vmatprep.subr.mxu0 0.0
    %171 = vmatpush1.msra.mxu0 0.0
    %172 = vmatprep.subr.mxu0 0.0
    %173 = vmatpush1.msra.mxu0 0.0
    %174 = vmatprep.subr.mxu0 0.0
    %175 = vmatpush1.msra.mxu0 0.0
    %176 = vmatprep.subr.mxu0 0.0
    %177 = vmatpush1.msra.mxu0 0.0
    %178 = vmatprep.subr.mxu0 0.0
    %179 = vmatpush1.msra.mxu0 0.0
    %180 = vmatprep.subr.mxu0 0.0
    %181 = vmatpush1.msra.mxu0 0.0
    %182 = vmatprep.subr.mxu0 0.0
    %183 = vmatpush1.msra.mxu0 0.0
    %184 = vmatprep.subr.mxu0 0.0
    %185 = vmatpush1.msra.mxu0 0.0
    %186 = vmatprep.subr.mxu0 0.0
    %187 = vmatpush1.msra.mxu0 0.0
    %188 = vmatprep.subr.mxu0 0.0
    %189 = vmatpush1.msra.mxu0 0.0
    %190 = vmatprep.subr.mxu0 0.0
    %191 = vmatpush1.msra.mxu0 0.0
    %192 = vmatprep.subr.mxu0 0.0
    %193 = vmatpush1.msra.mxu0 0.0
    %194 = vmatprep.subr.mxu0 0.0
    %195 = vmatpush1.msra.mxu0 0.0
    %196 = vmatprep.subr.mxu0 0.0
    %197 = vmatpush1.msra.mxu0 0.0
    %198 = vmatprep.subr.mxu0 0.0
    %199 = vmatpush1.msra.mxu0 0.0
    %200 = vmatprep.subr.mxu0 0.0
    %201 = vmatpush1.msra.mxu0 0.0
    %202 = vmatprep.mubr.f32.mxu0 0.0
    %203 = vmatmul.mubr.f32.gmra.mrb[0].mxu0 %v112
    %v204 = vpop.f32.mrb[0].mxu0
    %v205 = vadd.f32 %v136, %v204
    %v206 = vpop.f32.mrb[0].mxu0
    %207 = vdwg.mxu0
    %v208 = vmax.f32 %v205, 0.0
    %s209 = scalar_lea.vmem [#allocation2], 256
    %v210 = vld [vmem:[%s209] sm:$0xff]
    %v211 = vld [vmem:[%s209 + $0x8] sm:$0xff]
    %v212 = vld [vmem:[%s209 + $0x10] sm:$0xff]
    %v213 = vld [vmem:[%s209 + $0x18] sm:$0xff]
    %v214 = vld [vmem:[%s209 + $0x20] sm:$0xff]
    %v215 = vld [vmem:[%s209 + $0x28] sm:$0xff]
    %v216 = vld [vmem:[%s209 + $0x30] sm:$0xff]
    %v217 = vld [vmem:[%s209 + $0x38] sm:$0xff]
    %v218 = vld [vmem:[%s209 + $0x40] sm:$0xff]
    %v219 = vld [vmem:[%s209 + $0x48] sm:$0xff]
    %v220 = vld [vmem:[%s209 + $0x50] sm:$0xff]
    %v221 = vld [vmem:[%s209 + $0x58] sm:$0xff]
    %v222 = vld [vmem:[%s209 + $0x60] sm:$0xff]
    %v223 = vld [vmem:[%s209 + $0x68] sm:$0xff]
    %v224 = vld [vmem:[%s209 + $0x70] sm:$0xff]
    %v225 = vld [vmem:[%s209 + $0x78] sm:$0xff]
    %s226 = scalar_lea.vmem %s2, 2
    %v227 = vld [vmem:[%s226] sm:$0x1]
    %v229 = vlaneseq
    %v230 = vshrl.u32 %v229, 7
    %v231 = vsub.s32 0, %v230
    %v232 = vrot.slane %v227, %v231
    %234 = vmatprep.subr.mxu0 0.0
    %235 = vmatpush1.msra.mxu0 %v210
    %236 = vmatprep.subr.mxu0 0.0
    %237 = vmatpush1.msra.mxu0 %v211
    %238 = vmatprep.subr.mxu0 0.0
    %239 = vmatpush1.msra.mxu0 %v212
    %240 = vmatprep.subr.mxu0 0.0
    %241 = vmatpush1.msra.mxu0 %v213
    %242 = vmatprep.subr.mxu0 0.0
    %243 = vmatpush1.msra.mxu0 %v214
    %244 = vmatprep.subr.mxu0 0.0
    %245 = vmatpush1.msra.mxu0 %v215
    %246 = vmatprep.subr.mxu0 0.0
    %247 = vmatpush1.msra.mxu0 %v216
    %248 = vmatprep.subr.mxu0 0.0
    %249 = vmatpush1.msra.mxu0 %v217
    %250 = vmatprep.subr.mxu0 0.0
    %251 = vmatpush1.msra.mxu0 %v218
    %252 = vmatprep.subr.mxu0 0.0
    %253 = vmatpush1.msra.mxu0 %v219
    %254 = vmatprep.subr.mxu0 0.0
    %255 = vmatpush1.msra.mxu0 %v220
    %256 = vmatprep.subr.mxu0 0.0
    %257 = vmatpush1.msra.mxu0 %v221
    %258 = vmatprep.subr.mxu0 0.0
    %259 = vmatpush1.msra.mxu0 %v222
    %260 = vmatprep.subr.mxu0 0.0
    %261 = vmatpush1.msra.mxu0 %v223
    %262 = vmatprep.subr.mxu0 0.0
    %263 = vmatpush1.msra.mxu0 %v224
    %264 = vmatprep.subr.mxu0 0.0
    %265 = vmatpush1.msra.mxu0 %v225
    %266 = vmatprep.subr.mxu0 0.0
    %267 = vmatpush1.msra.mxu0 0.0
    %268 = vmatprep.subr.mxu0 0.0
    %269 = vmatpush1.msra.mxu0 0.0
    %270 = vmatprep.subr.mxu0 0.0
    %271 = vmatpush1.msra.mxu0 0.0
    %272 = vmatprep.subr.mxu0 0.0
    %273 = vmatpush1.msra.mxu0 0.0
    %274 = vmatprep.subr.mxu0 0.0
    %275 = vmatpush1.msra.mxu0 0.0
    %276 = vmatprep.subr.mxu0 0.0
    %277 = vmatpush1.msra.mxu0 0.0
    %278 = vmatprep.subr.mxu0 0.0
    %279 = vmatpush1.msra.mxu0 0.0
    %280 = vmatprep.subr.mxu0 0.0
    %281 = vmatpush1.msra.mxu0 0.0
    %282 = vmatprep.subr.mxu0 0.0
    %283 = vmatpush1.msra.mxu0 0.0
    %284 = vmatprep.subr.mxu0 0.0
    %285 = vmatpush1.msra.mxu0 0.0
    %286 = vmatprep.subr.mxu0 0.0
    %287 = vmatpush1.msra.mxu0 0.0
    %288 = vmatprep.subr.mxu0 0.0
    %289 = vmatpush1.msra.mxu0 0.0
    %290 = vmatprep.subr.mxu0 0.0
    %291 = vmatpush1.msra.mxu0 0.0
    %292 = vmatprep.subr.mxu0 0.0
    %293 = vmatpush1.msra.mxu0 0.0
    %294 = vmatprep.subr.mxu0 0.0
    %295 = vmatpush1.msra.mxu0 0.0
    %296 = vmatprep.subr.mxu0 0.0
    %297 = vmatpush1.msra.mxu0 0.0
    %298 = vmatprep.mubr.f32.mxu0 0.0
    %299 = vmatmul.mubr.f32.gmra.mrb[0].mxu0 %v208
    %v300 = vpop.f32.mrb[0].mxu0
    %v301 = vadd.f32 %v232, %v300
    %v302 = vpop.f32.mrb[0].mxu0
    %303 = vdwg.mxu0
    %v304 = vmax.f32 %v301, 0.0
    %vm305 = vcmask 64512
    %306 = vst.msk [vmem:[%s3] sm:$0xff] %vm305, %v304
    // Predicated region
    $region18: #{qnetwork_forward_batched.1} parent=1 // pred_check
      _
    $region19: #{qnetwork_forward_batched.1} parent=1 // pred_check_branch
      %308 = sbr.rel (0) target = $region21
    $region20: #{qnetwork_forward_batched.1} parent=1 // pred_region
      _
    $region21: #{qnetwork_forward_batched.1} parent=1 // pred_fallthru
      _
    // Predicated region
    $region22: #{qnetwork_forward_batched.1} parent=1 // pred_check
      _
    $region23: #{qnetwork_forward_batched.1} parent=1 // pred_check_branch
      %310 = sbr.rel (0) target = $region25
    $region24: #{qnetwork_forward_batched.1} parent=1 // pred_region
      _
    $region25: #{qnetwork_forward_batched.1} parent=1 // pred_fallthru
      _
    %311 = vsyncpa [#allocation3], 1

</llo_original>
